<compile_context>
chip_gen: v7x
topology: tpu7x:2x2x1
jax: 0.10.0
libtpu: 0.0.40
codegen_flags: <defaults>
</compile_context>

<pallas_src>
import math

import jax
import jax.numpy as jnp
from jax.experimental import pallas as pl
from jax.experimental.pallas import tpu as pltpu

EPS = 1e-5


# ----------------------------------------------------------------------------- helpers ----
def _vmem_capacity_bytes():
    try:
        return int(pltpu.get_tpu_info().vmem_capacity_bytes)
    except Exception:
        return 64 * 2 ** 20            # conservative default (v7x has 64 MiB per TensorCore)


def _vmem_limit(working_set_bytes):
    cap = _vmem_capacity_bytes()
    return int(min(int(cap * 0.85), max(32 * 2 ** 20, 2 * working_set_bytes)))


def _pick_node_tile(num_node, rows_per_node, min_rows=256, max_rows=2048):
    """Node-tile size: >= min_rows MXU rows per grid step, smallest such tile so the grid
    keeps as many steps as possible (pipelining + v7x megacore)."""
    divs = [d for d in range(8, num_node + 1, 8) if num_node % d == 0]
    if num_node not in divs:
        divs.append(num_node)
    divs.sort()
    good = [d for d in divs if min_rows <= d * rows_per_node <= max_rows]
    if good:
        return good[0]
    under = [d for d in divs if d * rows_per_node <= max_rows]
    return under[-1] if under else divs[0]


# ----------------------------------------------------------------------------- kernels ----
def _make_feature_kernel(tn, T, F_in, F_out):
    """Z[n, b, t, :] = x[b, n, t, :] @ W  (bf16 operands, f32 accumulation)."""

    def kernel(x_ref, w_ref, z_ref):
        # x_ref: (1, tn, T, F_in) bf16; w_ref: (F_in, F_out) bf16; z_ref: (tn, 1, T, F_out) f32
        xm = x_ref[...].reshape(tn * T, F_in)                   # free view (lanes unchanged)
        z = jnp.dot(xm, w_ref[...], preferred_element_type=jnp.float32)
        z_ref[...] = z.reshape(tn, 1, T, F_out)                 # free view

    return kernel


def _make_aggregate_bn_kernel(B, T, F_out, tile_n, BT):
    """out = BatchNorm(relu(adj @ Z + bias)) for one node-row tile, K-tiled over node cols."""
    cols = BT * F_out

    def kernel(adj_ref, z_ref, bias_ref, gamma_ref, beta_ref, o_ref, acc_ref):
        k = pl.program_id(1)

        @pl.when(k == 0)
        def _():
            acc_ref[...] = jnp.zeros_like(acc_ref)

        # f32 adjacency contraction (small vs the feature matmul; f32 keeps adj and the
        # intermediate un-quantized, per the review's accuracy notes).
        acc_ref[...] += jnp.dot(adj_ref[...], z_ref[...],
                                preferred_element_type=jnp.float32)

        @pl.when(k == pl.num_programs(1) - 1)
        def _():
            y = jnp.maximum(acc_ref[...] + bias_ref[...], 0.0)          # (tile_n, BT*F_out)
            cnt = jnp.float32(cols)
            mean = jnp.sum(y, axis=1, keepdims=True) / cnt              # (tile_n, 1)
            # Two-pass variance (avoids E[y^2]-mean^2 cancellation on post-ReLU data).
            var = jnp.sum((y - mean) ** 2, axis=1, keepdims=True) / cnt
            scale = gamma_ref[...] * jax.lax.rsqrt(var + EPS)
            shift = beta_ref[...] - mean * scale
            # Fused scale/shift + per-batch store straight into the PyTorch (B, N, T, F)
            # layout (no full ynorm temp, no output-side HBM transpose).
            for bb in range(B):
                seg = y[:, bb * T * F_out:(bb + 1) * T * F_out] * scale + shift
                o_ref[bb] = seg.reshape(tile_n, T, F_out).astype(o_ref.dtype)

    return kernel


# ----------------------------------------------------------------------------- wrapper ----
def gcn_block_forward(inputs, adj, weight, bias, gamma, beta, *,
                      out_dtype=jnp.float32, matmul_dtype=jnp.bfloat16, tile_n=None):
    """inputs: (B, N, T, F_in), adj: (N, N) -> (B, N, T, F_out)."""
    B, N, T, F_in = inputs.shape
    F_out = weight.shape[1]
    BT = B * T

    # Layout guards: keep in-kernel reshapes / slices lane- and sublane-aligned.
    assert F_in % 128 == 0 and F_out % 128 == 0, "pad feature dims to a multiple of 128"
    assert T % 8 == 0, "pad T to a multiple of 8"

    cap = _vmem_capacity_bytes()

    # Stage-A node tile (rows per step = tn_a * T) and stage-B node-row tile.
    tn_a = _pick_node_tile(N, T)
    if tile_n is None:
        tile_n = _pick_node_tile(N, BT)
    assert N % tile_n == 0 and (tile_n % 8 == 0 or tile_n == N), "bad node tile size"
    assert N % tn_a == 0 and (tn_a % 8 == 0 or tn_a == N), "bad node tile size"

    # K (node-column) tiling of the adjacency contraction: only when Z would not fit in VMEM.
    z_row_bytes = BT * F_out * 4
    if N * z_row_bytes <= cap // 3:
        tile_k = N
    else:
        cands = [d for d in range(128, N, 128)
                 if N % d == 0 and d * z_row_bytes <= cap // 3]
        tile_k = max(cands) if cands else N
    n_k = N // tile_k

    x_bf = inputs.astype(matmul_dtype)
    w_bf = weight.astype(matmul_dtype)
    adj_f32 = adj.astype(jnp.float32)
    bias_tiled = jnp.tile(bias.astype(jnp.float32), BT).reshape(1, BT * F_out)
    gamma2 = gamma.reshape(N, 1).astype(jnp.float32)
    beta2 = beta.reshape(N, 1).astype(jnp.float32)
    out_bytes = jnp.dtype(out_dtype).itemsize
    isz = jnp.dtype(matmul_dtype).itemsize

    feat_kernel = _make_feature_kernel(tn_a, T, F_in, F_out)
    agg_kernel = _make_aggregate_bn_kernel(B, T, F_out, tile_n, BT)

    def _spec(shape, index_map, single):
        if single:
            return pl.BlockSpec(shape, index_map, pipeline_mode=pl.Buffered(1))
        return pl.BlockSpec(shape, index_map)

    def _run(single_buffer_consts):
        # ---- stage A: Z = X @ W, node-major output layout fused into the out BlockSpec DMA.
        est_a = (2 * tn_a * T * F_in * isz + 2 * tn_a * T * F_out * 4
                 + (1 if single_buffer_consts else 2) * F_in * F_out * isz
                 + 4 * tn_a * T * max(F_in, F_out) * 4)
        z_nm = pl.pallas_call(
            feat_kernel,
            grid=(B, N // tn_a),
            out_shape=jax.ShapeDtypeStruct((N, B, T, F_out), jnp.float32),
            in_specs=[
                pl.BlockSpec((1, tn_a, T, F_in), lambda b, i: (b, i, 0, 0)),
                _spec((F_in, F_out), lambda b, i: (0, 0), single_buffer_consts),
            ],
            out_specs=pl.BlockSpec((tn_a, 1, T, F_out), lambda b, i: (i, b, 0, 0)),
            compiler_params=pltpu.CompilerParams(
                dimension_semantics=("parallel", "parallel"),
                vmem_limit_bytes=_vmem_limit(est_a)),
            cost_estimate=pl.CostEstimate(
                flops=2 * B * N * T * F_in * F_out,
                transcendentals=0,
                bytes_accessed=(B * N * T * F_in * isz + F_in * F_out * isz
                                + N * B * T * F_out * 4)),
        )(x_bf, w_bf)

        z_flat = z_nm.reshape(N, BT * F_out)        # row-major reshape: free, no data movement

        # ---- stage B: out = BN(relu(adj @ Z + bias)), node-row tiled, K-tiled when needed.
        single_z = single_buffer_consts and n_k == 1
        est_b = ((1 if single_z else 2) * tile_k * BT * F_out * 4        # Z block(s)
                 + tile_n * BT * F_out * 4                               # accumulator scratch
                 + 2 * B * tile_n * T * F_out * out_bytes                # output block
                 + 3 * tile_n * BT * F_out * 4                           # y / temps headroom
                 + 2 * tile_n * tile_k * 4 + BT * F_out * 4)             # adj blocks + bias
        out = pl.pallas_call(
            agg_kernel,
            grid=(N // tile_n, n_k),
            out_shape=jax.ShapeDtypeStruct((B, N, T, F_out), out_dtype),
            in_specs=[
                pl.BlockSpec((tile_n, tile_k), lambda i, k: (i, k)),         # adj row tile
                _spec((tile_k, BT * F_out), lambda i, k: (k, 0), single_z),  # Z (resident if n_k==1)
                _spec((1, BT * F_out), lambda i, k: (0, 0), single_buffer_consts),  # tiled bias
                pl.BlockSpec((tile_n, 1), lambda i, k: (i, 0)),              # gamma
                pl.BlockSpec((tile_n, 1), lambda i, k: (i, 0)),              # beta
            ],
            out_specs=pl.BlockSpec((B, tile_n, T, F_out), lambda i, k: (0, i, 0, 0)),
            scratch_shapes=[pltpu.VMEM((tile_n, BT * F_out), jnp.float32)],
            compiler_params=pltpu.CompilerParams(
                dimension_semantics=("parallel", "arbitrary"),
                vmem_limit_bytes=_vmem_limit(est_b)),
            cost_estimate=pl.CostEstimate(
                flops=2 * N * N * BT * F_out + 8 * N * BT * F_out,
                transcendentals=N,
                bytes_accessed=((N // tile_n if n_k > 1 else 1) * N * BT * F_out * 4
                                + N * N * 4 + B * N * T * F_out * out_bytes)),
        )(adj_f32, z_flat, bias_tiled, gamma2, beta2)
        return jax.block_until_ready(out)

    try:
        return _run(True)
    except Exception:
        # Fallback for jax versions without BlockSpec(pipeline_mode=pl.Buffered(...)).
        return _run(False)


# -------------------------------------------------------------------------- references ----
def gcn_block_ref(inputs, adj, weight, bias, gamma, beta):
    """Exact-f32 reference in the PyTorch op order (training-mode BatchNorm)."""
    lfs = jnp.einsum('ij,bjtf->bitf', adj, inputs, precision=jax.lax.Precision.HIGHEST)
    y = jax.nn.relu(jnp.einsum('bitf,fo->bito', lfs, weight,
                               precision=jax.lax.Precision.HIGHEST) + bias)
    mean = jnp.mean(y, axis=(0, 2, 3), keepdims=True)
    var = jnp.mean((y - mean) ** 2, axis=(0, 2, 3), keepdims=True)
    return ((y - mean) * jax.lax.rsqrt(var + EPS)
            * gamma[None, :, None, None] + beta[None, :, None, None])


def gcn_block_ref_matched(inputs, adj, weight, bias, gamma, beta,
                          matmul_dtype=jnp.bfloat16):
    """Reference in the kernel's op order / precision: Z = (x.bf16 @ W.bf16) with f32
    accumulation, then an all-f32 adjacency contraction + bias / ReLU / BatchNorm."""
    z = jnp.einsum('bntf,fo->bnto', inputs.astype(matmul_dtype),
                   weight.astype(matmul_dtype), preferred_element_type=jnp.float32)
    y = jax.nn.relu(jnp.einsum('ij,bjto->bito', adj, z,
                               precision=jax.lax.Precision.HIGHEST) + bias)
    mean = jnp.mean(y, axis=(0, 2, 3), keepdims=True)
    var = jnp.mean((y - mean) ** 2, axis=(0, 2, 3), keepdims=True)
    return ((y - mean) * jax.lax.rsqrt(var + EPS)
            * gamma[None, :, None, None] + beta[None, :, None, None])


# -------------------------------------------------------------------------------- main ----
if __name__ == "__main__":
    # Small, TPU-friendly shapes consistent with the module's forward:
    # 2 batches, 32 graph nodes, 8 timestamps, 128 -> 128 features.
    B, N, T, F_in, F_out = 2, 32, 8, 128, 128

    key = jax.random.PRNGKey(0)
    k_x, k_adj, k_w = jax.random.split(key, 3)

    inputs = jax.random.normal(k_x, (B, N, T, F_in), jnp.float32)
    adj = jax.random.uniform(k_adj, (N, N), jnp.float32)

    # Deterministic parameter init mirroring reset_parameter():
    stdv = 1.0 / math.sqrt(F_out)                         # weight.shape[1]
    weight = jax.random.uniform(k_w, (F_in, F_out), jnp.float32, -stdv, stdv)
    bias = jnp.zeros((F_out,), jnp.float32)               # self.bais.zero_()
    gamma = jnp.ones((N,), jnp.float32)                   # BatchNorm2d default affine
    beta = jnp.zeros((N,), jnp.float32)

    out = gcn_block_forward(inputs, adj, weight, bias, gamma, beta)
    jax.block_until_ready(out)
    assert out.shape == (B, N, T, F_out), out.shape

    # Tight check vs a reference that mirrors the kernel's op order and precision.
    ref_matched = gcn_block_ref_matched(inputs, adj, weight, bias, gamma, beta)
    assert jnp.allclose(out, ref_matched, atol=2e-2, rtol=2e-2), \
        "mismatch vs matched-precision JAX reference"

    # Loose sanity check vs the exact f32, PyTorch-order reference (slack covers the bf16
    # rounding of x/W in the feature matmul — the only reduced-precision stage left).
    ref_f32 = gcn_block_ref(inputs, adj, weight, bias, gamma, beta)
    assert jnp.allclose(out, ref_f32, atol=1e-1, rtol=1e-1), \
        "mismatch vs f32 JAX reference"

    print("KERNEL_OK")
</pallas_src>

<mosaic_0001>
module attributes {stable_mosaic.version = 11 : i64} {
  func.func @kernel(%arg0: i32, %arg1: i32, %arg2: memref<1x32x8x128xbf16, #tpu.memory_space<vmem>>, %arg3: memref<128x128xbf16, #tpu.memory_space<vmem>>, %arg4: memref<32x1x8x128xf32, #tpu.memory_space<vmem>>) attributes {dimension_semantics = [#tpu.dimension_semantics<parallel>, #tpu.dimension_semantics<parallel>], iteration_bounds = array<i64: 2, 1>, scalar_prefetch = 0 : i64, scratch_operands = 0 : i64, tpu.core_type = #tpu.core_type<tc>, window_params = [{transform_indices = @transform_0, window_bounds = array<i64: 1, 32, 8, 128>}, {pipeline_mode = #tpu.pipeline_mode<synchronous>, transform_indices = @transform_1, window_bounds = array<i64: 128, 128>}, {transform_indices = @transform_2, window_bounds = array<i64: 32, 1, 8, 128>}]} {
    %c0 = arith.constant 0 : index
    %c0_0 = arith.constant 0 : index
    %c0_1 = arith.constant 0 : index
    %c0_2 = arith.constant 0 : index
    %0 = vector.load %arg2[%c0, %c0_0, %c0_1, %c0_2] : memref<1x32x8x128xbf16, #tpu.memory_space<vmem>>, vector<1x32x8x128xbf16>
    %1 = vector.shape_cast %0 : vector<1x32x8x128xbf16> to vector<256x128xbf16>
    %c0_3 = arith.constant 0 : index
    %c0_4 = arith.constant 0 : index
    %2 = vector.load %arg3[%c0_3, %c0_4] : memref<128x128xbf16, #tpu.memory_space<vmem>>, vector<128x128xbf16>
    %cst = arith.constant dense<0.000000e+00> : vector<256x128xf32>
    %3 = tpu.matmul %1, %2, %cst {dimension_numbers = #tpu.dot_dimension_numbers<[1], [0], [0], [1], [0, 0, 1, 1], [], []>} : vector<256x128xbf16>, vector<128x128xbf16>, vector<256x128xf32> -> vector<256x128xf32>
    %4 = vector.shape_cast %3 : vector<256x128xf32> to vector<32x1x8x128xf32>
    %c0_5 = arith.constant 0 : index
    %c0_6 = arith.constant 0 : index
    %c0_7 = arith.constant 0 : index
    %c0_8 = arith.constant 0 : index
    %5 = vector.load %arg4[%c0_5, %c0_6, %c0_7, %c0_8] : memref<32x1x8x128xf32, #tpu.memory_space<vmem>>, vector<32x1x8x128xf32>
    tpu.vector_store %arg4[%c0_5, %c0_6, %c0_7, %c0_8], %4 {strides = array<i32>} : memref<32x1x8x128xf32, #tpu.memory_space<vmem>>, vector<32x1x8x128xf32>,
    return
  }
  func.func @transform_0(%arg0: i32, %arg1: i32) -> (i32, i32, i32, i32) {
    %c0_i32 = arith.constant 0 : i32
    %c0_i32_0 = arith.constant 0 : i32
    %c0_i32_1 = arith.constant 0 : i32
    return %arg0, %arg1, %c0_i32, %c0_i32_0 : i32, i32, i32, i32
  }
  func.func @transform_1(%arg0: i32, %arg1: i32) -> (i32, i32) {
    %c0_i32 = arith.constant 0 : i32
    %c0_i32_0 = arith.constant 0 : i32
    %c0_i32_1 = arith.constant 0 : i32
    return %c0_i32, %c0_i32_0 : i32, i32
  }
  func.func @transform_2(%arg0: i32, %arg1: i32) -> (i32, i32, i32, i32) {
    %c0_i32 = arith.constant 0 : i32
    %c0_i32_0 = arith.constant 0 : i32
    %c0_i32_1 = arith.constant 0 : i32
    return %arg1, %arg0, %c0_i32, %c0_i32_0 : i32, i32, i32, i32
  }
}

module attributes {stable_mosaic.version = 11 : i64} {
  func.func @kernel(%arg0: i32, %arg1: i32, %arg2: memref<1x32x8x128xbf16, #tpu.memory_space<vmem>>, %arg3: memref<128x128xbf16, #tpu.memory_space<vmem>>, %arg4: memref<32x1x8x128xf32, #tpu.memory_space<vmem>>) attributes {dimension_semantics = [#tpu.dimension_semantics<parallel>, #tpu.dimension_semantics<parallel>], iteration_bounds = array<i64: 2, 1>, scalar_prefetch = 0 : i64, scratch_operands = 0 : i64, tpu.core_type = #tpu.core_type<tc>, window_params = [{transform_indices = @transform_0, window_bounds = array<i64: 1, 32, 8, 128>}, {pipeline_mode = #tpu.pipeline_mode<synchronous>, transform_indices = @transform_1, window_bounds = array<i64: 128, 128>}, {transform_indices = @transform_2, window_bounds = array<i64: 32, 1, 8, 128>}]} {
    %c0 = arith.constant 0 : index
    %c0_0 = arith.constant 0 : index
    %c0_1 = arith.constant 0 : index
    %c0_2 = arith.constant 0 : index
    %0 = vector.load %arg2[%c0, %c0_0, %c0_1, %c0_2] : memref<1x32x8x128xbf16, #tpu.memory_space<vmem>>, vector<1x32x8x128xbf16>
    %1 = vector.shape_cast %0 : vector<1x32x8x128xbf16> to vector<256x128xbf16>
    %c0_3 = arith.constant 0 : index
    %c0_4 = arith.constant 0 : index
    %2 = vector.load %arg3[%c0_3, %c0_4] : memref<128x128xbf16, #tpu.memory_space<vmem>>, vector<128x128xbf16>
    %cst = arith.constant dense<0.000000e+00> : vector<256x128xf32>
    %3 = tpu.matmul %1, %2, %cst {dimension_numbers = #tpu.dot_dimension_numbers<[1], [0], [0], [1], [0, 0, 1, 1], [], []>} : vector<256x128xbf16>, vector<128x128xbf16>, vector<256x128xf32> -> vector<256x128xf32>
    %4 = vector.shape_cast %3 : vector<256x128xf32> to vector<32x1x8x128xf32>
    %c0_5 = arith.constant 0 : index
    %c0_6 = arith.constant 0 : index
    %c0_7 = arith.constant 0 : index
    %c0_8 = arith.constant 0 : index
    %5 = vector.load %arg4[%c0_5, %c0_6, %c0_7, %c0_8] : memref<32x1x8x128xf32, #tpu.memory_space<vmem>>, vector<32x1x8x128xf32>
    tpu.vector_store %arg4[%c0_5, %c0_6, %c0_7, %c0_8], %4 {strides = array<i32>} : memref<32x1x8x128xf32, #tpu.memory_space<vmem>>, vector<32x1x8x128xf32>,
    return
  }
  func.func @transform_0(%arg0: i32, %arg1: i32) -> (i32, i32, i32, i32) {
    %c0_i32 = arith.constant 0 : i32
    %c0_i32_0 = arith.constant 0 : i32
    %c0_i32_1 = arith.constant 0 : i32
    return %arg0, %arg1, %c0_i32, %c0_i32_0 : i32, i32, i32, i32
  }
  func.func @transform_1(%arg0: i32, %arg1: i32) -> (i32, i32) {
    %c0_i32 = arith.constant 0 : i32
    %c0_i32_0 = arith.constant 0 : i32
    %c0_i32_1 = arith.constant 0 : i32
    return %c0_i32, %c0_i32_0 : i32, i32
  }
  func.func @transform_2(%arg0: i32, %arg1: i32) -> (i32, i32, i32, i32) {
    %c0_i32 = arith.constant 0 : i32
    %c0_i32_0 = arith.constant 0 : i32
    %c0_i32_1 = arith.constant 0 : i32
    return %arg1, %arg0, %c0_i32, %c0_i32_0 : i32, i32, i32, i32
  }
}

</mosaic_0001>

<llo_original>
// kernel: tpu_custom_call.1
$region0: #{tpu_custom_call.1}
  #allocation0 [shape = 'u32[]', space=smem, size = 0x4, offset = 0x4, fixed_abs, tag = 'smem constant byte address 0x4 - core index']
  #allocation1 [shape = 'u32[144,128]{1,0:T(1,128)}', space=vmem, size = 0x12000, scoped, tag = 'internal scratch']
  %s0 = inlined_call_operand.hbm [shape: bf16[2,32,8,128], index: 0, kind: input, shape index: {}]
  %s1 = inlined_call_operand.hbm [shape: bf16[128,128], index: 1, kind: input, shape index: {}]
  %s2 = inlined_call_operand.hbm [shape: f32[32,2,8,128], index: 2, kind: output, shape index: {}]
  %s3 = sld [smem:[#allocation0]]
  $region49: #{tpu_custom_call.1} parent=0
    _
  %s5 = ssub.s32 1, %s3
  %s6 = scalar_select 0, %s5, %s3
  $region1: #{tpu_custom_call.1} parent=0
    #allocation2 [shape = 'u8[131072]{0}', space=vmem, size = 0x20000, scoped, tag = 'input window, operand 0']
    #allocation3 [shape = 's32[2]{0}', space=sflag, size = 0x8, scoped, tag = 'scoped memory for tpu_custom_call.1']
    #allocation4 [shape = 's32[2]{0}', space=sflag, size = 0x8, scoped, tag = 'scoped memory for tpu_custom_call.1']
    #allocation5 [shape = 'u8[32768]{0}', space=vmem, size = 0x8000, scoped, tag = 'input window, operand 1, single buffered']
    #allocation6 [shape = 's32[1]{0}', space=sflag, size = 0x4, scoped, tag = 'scoped memory for tpu_custom_call.1']
    #allocation7 [shape = 'u8[262144]{0}', space=vmem, size = 0x40000, scoped, tag = 'output window, operand 0']
    %7 = vsyncpa [#allocation3], 0
    %s8 = scalar_lea.sflag [#allocation3], 1
    %9 = vsyncpa %s8, 0
    %10 = vsyncpa [#allocation6], 0
    %11 = vsyncpa [#allocation4], 0
    %s12 = scalar_lea.sflag [#allocation4], 1
    %13 = vsyncpa %s12, 0
    loop: start=0, step=1, limit=4
    $region2: #{tpu_custom_call.1} parent=1 // loop_pre_header
      _
    $region3: #{tpu_custom_call.1} parent=1 // loop_header
      %s15 = sphi 0, %s19
      %p16 = scmp.ge.s32.totalorder %s15, 4
      %s22 = sphi 0, %s34
      %s23 = sphi 0, %s30
      %s24 = sphi 0, %s22
      %s25 = sphi 0, %s23
      %s26 = sphi 0, %s24
      %s27 = sphi 0, %s25
      %s39 = sphi 0, %s41
      %s42 = sphi 0, %s39
      %s43 = sphi 0, %s42
      %s59 = sphi 0, %s43
      %s63 = sphi 0, %s63
      %s65 = sphi 0, %s63
      %s66 = sphi 0, %s65
      %s80 = sphi 0, %s66
      %s88 = sphi 0, %s90
      %s91 = sphi 0, %s88
      %s92 = sphi 0, %s91
      %s108 = sphi 0, %s92
    $region4: #{tpu_custom_call.1} parent=1 // loop_header_branch
      %18 = sbr.rel (%p16) target = $region8
    $region5: #{tpu_custom_call.1} parent=1 // loop_body
      %s20 = ssub.s32 %s15, 1
      %s21 = ssub.s32 %s15, 2
      %s28 = sadd.s32 1, %s23
      %p29 = scmp.ge.s32.totalorder %s28, 1
      %s30 = scalar_select %p29, 0, %s28
      %s31 = sadd.s32 1, %s22
      %s32 = scalar_select %p29, %s31, %s22
      %p33 = scmp.ge.s32.totalorder %s32, 2
      %s34 = scalar_select %p33, 0, %s32
      %s35 = ssub.s32 %s22, %s34
      %s36 = ssub.s32 %s23, %s30
      %s37 = sor.u32 %s35, %s36
      %p38 = scmp.eq.s32.totalorder %s37, 0
      %s40 = sadd.s32 %s39, 1
      %s41 = scalar_select %p38, %s39, %s40
      %p44 = pneg %p38
      %p45 = scmp.eq.s32.totalorder %s15, 1
      %p46 = por %p44, %p45
      %p47 = scmp.ne.s32.totalorder %s39, %s42
      %p48 = scmp.eq.s32.totalorder %s15, 0
      %p49 = por %p47, %p48
      %p50 = scmp.ne.s32.totalorder %s39, %s42
      %p51 = scmp.eq.s32.totalorder %s20, 1
      %p52 = por %p50, %p51
      %p53 = scmp.ne.s32.totalorder %s42, %s43
      %p54 = scmp.eq.s32.totalorder %s20, 0
      %p55 = por %p53, %p54
      %p56 = scmp.ne.s32.totalorder %s42, %s43
      %p57 = scmp.eq.s32.totalorder %s21, 1
      %p58 = por %p56, %p57
      %p60 = scmp.ne.s32.totalorder %s43, %s59
      %p61 = scmp.eq.s32.totalorder %s21, 0
      %p62 = por %p60, %p61
      %s64 = sadd.s32 %s63, 1
      %p67 = scmp.eq.s32.totalorder %s15, 1
      %p68 = scmp.ne.s32.totalorder %s63, %s65
      %p69 = scmp.eq.s32.totalorder %s15, 0
      %p70 = por %p68, %p69
      %p71 = scmp.ne.s32.totalorder %s63, %s65
      %p72 = scmp.eq.s32.totalorder %s20, 1
      %p73 = por %p71, %p72
      %p74 = scmp.ne.s32.totalorder %s65, %s66
      %p75 = scmp.eq.s32.totalorder %s20, 0
      %p76 = por %p74, %p75
      %p77 = scmp.ne.s32.totalorder %s65, %s66
      %p78 = scmp.eq.s32.totalorder %s21, 1
      %p79 = por %p77, %p78
      %p81 = scmp.ne.s32.totalorder %s66, %s80
      %p82 = scmp.eq.s32.totalorder %s21, 0
      %p83 = por %p81, %p82
      %s84 = ssub.s32 %s23, %s30
      %s85 = ssub.s32 %s22, %s34
      %s86 = sor.u32 %s84, %s85
      %p87 = scmp.eq.s32.totalorder %s86, 0
      %s89 = sadd.s32 %s88, 1
      %s90 = scalar_select %p87, %s88, %s89
      %p93 = pneg %p87
      %p94 = scmp.eq.s32.totalorder %s15, 1
      %p95 = por %p93, %p94
      %p96 = scmp.ne.s32.totalorder %s88, %s91
      %p97 = scmp.eq.s32.totalorder %s15, 0
      %p98 = por %p96, %p97
      %p99 = scmp.ne.s32.totalorder %s88, %s91
      %p100 = scmp.eq.s32.totalorder %s20, 1
      %p101 = por %p99, %p100
      %p102 = scmp.ne.s32.totalorder %s91, %s92
      %p103 = scmp.eq.s32.totalorder %s20, 0
      %p104 = por %p102, %p103
      %p105 = scmp.ne.s32.totalorder %s91, %s92
      %p106 = scmp.eq.s32.totalorder %s21, 1
      %p107 = por %p105, %p106
      %p109 = scmp.ne.s32.totalorder %s92, %s108
      %p110 = scmp.eq.s32.totalorder %s21, 0
      %p111 = por %p109, %p110
      %p112 = scmp.le.s32.totalorder 1, %s15
      %p113 = scmp.lt.s32.totalorder %s15, 3
      %p114 = pnand %p112, %p113
      %p115 = pneg %p114
      // Predicated region
      $region9: #{tpu_custom_call.1} parent=5 // pred_check
        _
      $region10: #{tpu_custom_call.1} parent=5 // pred_check_branch
        %117 = sbr.rel (%p114) target = $region12
      $region11: #{tpu_custom_call.1} parent=5 // pred_region
        %s118 = ssub.s32 %s15, 1
        // Predicated region
        $region13: #{tpu_custom_call.1} parent=11 // pred_check
          %p119 = pneg %p76
        $region14: #{tpu_custom_call.1} parent=11 // pred_check_branch
          %121 = sbr.rel (%p119) target = $region16
        $region15: #{tpu_custom_call.1} parent=11 // pred_region
          %s123 = ssub.s32 1024, 1024
          %124 = vsyncadd [#allocation6], %s123
          %s125 = sshll.u32 [#allocation5], 4
          %s126 = int_to_ptr.vmem [resolvable:$true] %s125
          %131 = dma.hbm_to_vmem [thread:$0]  %s1, 1024, %s126, [#allocation6], 64, 64, 4
        $region16: #{tpu_custom_call.1} parent=11 // pred_fallthru
          _
      $region12: #{tpu_custom_call.1} parent=5 // pred_fallthru
        _
      %p132 = scmp.lt.s32.totalorder %s15, 2
      // Predicated region
      $region17: #{tpu_custom_call.1} parent=5 // pred_check
        %p133 = pneg %p132
      $region18: #{tpu_custom_call.1} parent=5 // pred_check_branch
        %135 = sbr.rel (%p133) target = $region20
      $region19: #{tpu_custom_call.1} parent=5 // pred_region
        // Predicated region
        $region21: #{tpu_custom_call.1} parent=19 // pred_check
          %p136 = pneg %p49
        $region22: #{tpu_custom_call.1} parent=19 // pred_check_branch
          %138 = sbr.rel (%p136) target = $region24
        $region23: #{tpu_custom_call.1} parent=19 // pred_region
          %s139 = sand.u32 %s39, 1
          %s140 = scalar_lea.sflag [#allocation3], %s139
          %s141 = sand.u32 %s39, 1
          %s142 = smul.addr %s141, 128
          %s143 = scalar_lea.vmem [#allocation2], %s142
          %s144 = smul.u32 32, %s23
          %s146 = ssub.s32 2048, 2048
          %147 = vsyncadd %s140, %s146
          %s148 = smul.addr %s22, 32
          %s149 = sadd.s32 %s144, %s148
          %s150 = smul.addr %s149, 64
          %s151 = scalar_lea.hbm %s0, %s150
          %s152 = sshll.u32 %s143, 4
          %s153 = int_to_ptr.vmem [resolvable:$true] %s152
          %158 = dma.hbm_to_vmem [thread:$0]  %s151, 2048, %s153, %s140, 64, 64, 4
        $region24: #{tpu_custom_call.1} parent=19 // pred_fallthru
          _
      $region20: #{tpu_custom_call.1} parent=5 // pred_fallthru
        _
      %p159 = scmp.le.s32.totalorder 1, %s15
      %p160 = scmp.lt.s32.totalorder %s15, 3
      %p161 = pnand %p159, %p160
      %p162 = pneg %p161
      // Predicated region
      $region25: #{tpu_custom_call.1} parent=5 // pred_check
        _
      $region26: #{tpu_custom_call.1} parent=5 // pred_check_branch
        %164 = sbr.rel (%p161) target = $region28
      $region27: #{tpu_custom_call.1} parent=5 // pred_region
        %s165 = ssub.s32 %s15, 1
        %s166 = sand.u32 %s42, 1
        %s167 = scalar_lea.sflag [#allocation3], %s166
        %s168 = sand.u32 %s42, 1
        %s169 = smul.addr %s168, 128
        %s170 = scalar_lea.vmem [#allocation2], %s169
        // Predicated region
        $region29: #{tpu_custom_call.1} parent=27 // pred_check
          %p171 = pneg %p55
        $region30: #{tpu_custom_call.1} parent=27 // pred_check_branch
          %173 = sbr.rel (%p171) target = $region32
        $region31: #{tpu_custom_call.1} parent=27 // pred_region
          %174 = dma.done %s167, 2048
        $region32: #{tpu_custom_call.1} parent=27 // pred_fallthru
          _
        // Predicated region
        $region33: #{tpu_custom_call.1} parent=27 // pred_check
          %p175 = pneg %p76
        $region34: #{tpu_custom_call.1} parent=27 // pred_check_branch
          %177 = sbr.rel (%p175) target = $region36
        $region35: #{tpu_custom_call.1} parent=27 // pred_region
          %178 = dma.done [#allocation6], 1024
        $region36: #{tpu_custom_call.1} parent=27 // pred_fallthru
          _
        %s179 = sand.u32 %s42, 1
        %s180 = scalar_lea.sflag [#allocation3], %s179
        %s181 = sand.u32 %s42, 1
        %s182 = smul.addr %s181, 128
        %s183 = scalar_lea.vmem [#allocation2], %s182
        %p184 = pneg %p55
        %p185 = pneg %p52
        %p186 = pneg %p76
        %p187 = pneg %p73
        %p188 = pneg %p104
        %p189 = pneg %p101
        %s190 = sand.u32 %s91, 1
        %s191 = scalar_lea.sflag [#allocation4], %s190
        %s192 = sand.u32 %s91, 1
        %s193 = smul.addr %s192, 256
        %s194 = scalar_lea.vmem [#allocation7], %s193
        %s195 = smul.u32 32, %s25
        %s196 = smul.u32 32, %s25
        %v198 = vld [vmem:[%s170] sm:$0xf]
        %v199 = vld [vmem:[%s170 + $0x4] sm:$0xf]
        %v200 = vld [vmem:[%s170 + $0x8] sm:$0xf]
        %v201 = vld [vmem:[%s170 + $0xc] sm:$0xf]
        %v202 = vld [vmem:[%s170 + $0x10] sm:$0xf]
        %v203 = vld [vmem:[%s170 + $0x14] sm:$0xf]
        %v204 = vld [vmem:[%s170 + $0x18] sm:$0xf]
        %v205 = vld [vmem:[%s170 + $0x1c] sm:$0xf]
        %v206 = vld [vmem:[%s170 + $0x20] sm:$0xf]
        %v207 = vld [vmem:[%s170 + $0x24] sm:$0xf]
        %v208 = vld [vmem:[%s170 + $0x28] sm:$0xf]
        %v209 = vld [vmem:[%s170 + $0x2c] sm:$0xf]
        %v210 = vld [vmem:[%s170 + $0x30] sm:$0xf]
        %v211 = vld [vmem:[%s170 + $0x34] sm:$0xf]
        %v212 = vld [vmem:[%s170 + $0x38] sm:$0xf]
        %v213 = vld [vmem:[%s170 + $0x3c] sm:$0xf]
        %v214 = vld [vmem:[%s170 + $0x40] sm:$0xf]
        %v215 = vld [vmem:[%s170 + $0x44] sm:$0xf]
        %v216 = vld [vmem:[%s170 + $0x48] sm:$0xf]
        %v217 = vld [vmem:[%s170 + $0x4c] sm:$0xf]
        %v218 = vld [vmem:[%s170 + $0x50] sm:$0xf]
        %v219 = vld [vmem:[%s170 + $0x54] sm:$0xf]
        %v220 = vld [vmem:[%s170 + $0x58] sm:$0xf]
        %v221 = vld [vmem:[%s170 + $0x5c] sm:$0xf]
        %v222 = vld [vmem:[%s170 + $0x60] sm:$0xf]
        %v223 = vld [vmem:[%s170 + $0x64] sm:$0xf]
        %v224 = vld [vmem:[%s170 + $0x68] sm:$0xf]
        %v225 = vld [vmem:[%s170 + $0x6c] sm:$0xf]
        %v226 = vld [vmem:[%s170 + $0x70] sm:$0xf]
        %v227 = vld [vmem:[%s170 + $0x74] sm:$0xf]
        %v228 = vld [vmem:[%s170 + $0x78] sm:$0xf]
        %v229 = vld [vmem:[%s170 + $0x7c] sm:$0xf]
        %v230 = vld [vmem:[#allocation5] sm:$0xf]
        %v231 = vld [vmem:[#allocation5 + $0x4] sm:$0xf]
        %v232 = vld [vmem:[#allocation5 + $0x8] sm:$0xf]
        %v233 = vld [vmem:[#allocation5 + $0xc] sm:$0xf]
        %v234 = vld [vmem:[#allocation5 + $0x10] sm:$0xf]
        %v235 = vld [vmem:[#allocation5 + $0x14] sm:$0xf]
        %v236 = vld [vmem:[#allocation5 + $0x18] sm:$0xf]
        %v237 = vld [vmem:[#allocation5 + $0x1c] sm:$0xf]
        %v238 = vld [vmem:[#allocation5 + $0x20] sm:$0xf]
        %v239 = vld [vmem:[#allocation5 + $0x24] sm:$0xf]
        %v240 = vld [vmem:[#allocation5 + $0x28] sm:$0xf]
        %v241 = vld [vmem:[#allocation5 + $0x2c] sm:$0xf]
        %v242 = vld [vmem:[#allocation5 + $0x30] sm:$0xf]
        %v243 = vld [vmem:[#allocation5 + $0x34] sm:$0xf]
        %v244 = vld [vmem:[#allocation5 + $0x38] sm:$0xf]
        %v245 = vld [vmem:[#allocation5 + $0x3c] sm:$0xf]
        %v278 = vunpack.c.l.b16 %v198
        %v279 = vunpack.c.l.b16 %v199
        %v280 = vunpack.c.l.b16 %v200
        %v281 = vunpack.c.l.b16 %v201
        %v282 = vunpack.c.l.b16 %v202
        %v283 = vunpack.c.l.b16 %v203
        %v284 = vunpack.c.l.b16 %v204
        %v285 = vunpack.c.l.b16 %v205
        %v286 = vunpack.c.l.b16 %v206
        %v287 = vunpack.c.l.b16 %v207
        %v288 = vunpack.c.l.b16 %v208
        %v289 = vunpack.c.l.b16 %v209
        %v290 = vunpack.c.l.b16 %v210
        %v291 = vunpack.c.l.b16 %v211
        %v292 = vunpack.c.l.b16 %v212
        %v293 = vunpack.c.l.b16 %v213
        %v294 = vunpack.c.l.b16 %v214
        %v295 = vunpack.c.l.b16 %v215
        %v296 = vunpack.c.l.b16 %v216
        %v297 = vunpack.c.l.b16 %v217
        %v298 = vunpack.c.l.b16 %v218
        %v299 = vunpack.c.l.b16 %v219
        %v300 = vunpack.c.l.b16 %v220
        %v301 = vunpack.c.l.b16 %v221
        %v302 = vunpack.c.l.b16 %v222
        %v303 = vunpack.c.l.b16 %v223
        %v304 = vunpack.c.l.b16 %v224
        %v305 = vunpack.c.l.b16 %v225
        %v306 = vunpack.c.l.b16 %v226
        %v307 = vunpack.c.l.b16 %v227
        %v308 = vunpack.c.l.b16 %v228
        %v309 = vunpack.c.l.b16 %v229
        %v310 = vpack.c.b16 %v279, %v278
        %v311 = vpack.c.b16 %v281, %v280
        %v312 = vpack.c.b16 %v283, %v282
        %v313 = vpack.c.b16 %v285, %v284
        %v314 = vpack.c.b16 %v287, %v286
        %v315 = vpack.c.b16 %v289, %v288
        %v316 = vpack.c.b16 %v291, %v290
        %v317 = vpack.c.b16 %v293, %v292
        %v318 = vpack.c.b16 %v295, %v294
        %v319 = vpack.c.b16 %v297, %v296
        %v320 = vpack.c.b16 %v299, %v298
        %v321 = vpack.c.b16 %v301, %v300
        %v322 = vpack.c.b16 %v303, %v302
        %v323 = vpack.c.b16 %v305, %v304
        %v324 = vpack.c.b16 %v307, %v306
        %v325 = vpack.c.b16 %v309, %v308
        %v358 = vunpack.c.l.b16 %v230
        %v359 = vunpack.c.l.b16 %v231
        %v360 = vunpack.c.l.b16 %v232
        %v361 = vunpack.c.l.b16 %v233
        %v362 = vunpack.c.l.b16 %v234
        %v363 = vunpack.c.l.b16 %v235
        %v364 = vunpack.c.l.b16 %v236
        %v365 = vunpack.c.l.b16 %v237
        %v366 = vunpack.c.l.b16 %v238
        %v367 = vunpack.c.l.b16 %v239
        %v368 = vunpack.c.l.b16 %v240
        %v369 = vunpack.c.l.b16 %v241
        %v370 = vunpack.c.l.b16 %v242
        %v371 = vunpack.c.l.b16 %v243
        %v372 = vunpack.c.l.b16 %v244
        %v373 = vunpack.c.l.b16 %v245
        %v374 = vpack.c.b16 %v359, %v358
        %v375 = vpack.c.b16 %v361, %v360
        %v376 = vpack.c.b16 %v363, %v362
        %v377 = vpack.c.b16 %v365, %v364
        %v378 = vpack.c.b16 %v367, %v366
        %v379 = vpack.c.b16 %v369, %v368
        %v380 = vpack.c.b16 %v371, %v370
        %v381 = vpack.c.b16 %v373, %v372
        %390 = vmatprep.subr.bf16.mxu0 0
        %391 = vmatpush1.bf16.msra.mxu0 %v374
        %392 = vmatprep.subr.bf16.mxu0 0
        %393 = vmatpush1.bf16.msra.mxu0 %v375
        %394 = vmatprep.subr.bf16.mxu0 0
        %395 = vmatpush1.bf16.msra.mxu0 %v376
        %396 = vmatprep.subr.bf16.mxu0 0
        %397 = vmatpush1.bf16.msra.mxu0 %v377
        %398 = vmatprep.subr.bf16.mxu0 0
        %399 = vmatpush1.bf16.msra.mxu0 %v378
        %400 = vmatprep.subr.bf16.mxu0 0
        %401 = vmatpush1.bf16.msra.mxu0 %v379
        %402 = vmatprep.subr.bf16.mxu0 0
        %403 = vmatpush1.bf16.msra.mxu0 %v380
        %404 = vmatprep.subr.bf16.mxu0 0
        %405 = vmatpush1.bf16.msra.mxu0 %v381
        %406 = vmatprep.subr.bf16.mxu0 0
        %407 = vmatpush1.bf16.msra.mxu0 0
        %408 = vmatprep.subr.bf16.mxu0 0
        %409 = vmatpush1.bf16.msra.mxu0 0
        %410 = vmatprep.subr.bf16.mxu0 0
        %411 = vmatpush1.bf16.msra.mxu0 0
        %412 = vmatprep.subr.bf16.mxu0 0
        %413 = vmatpush1.bf16.msra.mxu0 0
        %414 = vmatprep.subr.bf16.mxu0 0
        %415 = vmatpush1.bf16.msra.mxu0 0
        %416 = vmatprep.subr.bf16.mxu0 0
        %417 = vmatpush1.bf16.msra.mxu0 0
        %418 = vmatprep.subr.bf16.mxu0 0
        %419 = vmatpush1.bf16.msra.mxu0 0
        %420 = vmatprep.subr.bf16.mxu0 0
        %421 = vmatpush1.bf16.msra.mxu0 0
        %422 = vmatprep.mubr.bf16.mxu0 0
        %423 = vmatmul.mubr.bf16.gmra.mrb[0].mxu0 %v310
        %v424 = vpop.f32.mrb[0].mxu0
        %v425 = vadd.f32 0.0, %v424
        %v426 = vpop.f32.mrb[0].mxu0
        %v427 = vpop.f32.mrb[0].mxu0
        %v428 = vadd.f32 0.0, %v427
        %v429 = vpop.f32.mrb[0].mxu0
        %430 = vmatprep.mubr.bf16.mxu0 0
        %431 = vmatmul.mubr.bf16.gmra.mrb[0].mxu0 %v311
        %v432 = vpop.f32.mrb[0].mxu0
        %v433 = vadd.f32 0.0, %v432
        %v434 = vpop.f32.mrb[0].mxu0
        %v435 = vpop.f32.mrb[0].mxu0
        %v436 = vadd.f32 0.0, %v435
        %v437 = vpop.f32.mrb[0].mxu0
        %438 = vmatprep.mubr.bf16.mxu0 0
        %439 = vmatmul.mubr.bf16.gmra.mrb[0].mxu0 %v312
        %v440 = vpop.f32.mrb[0].mxu0
        %v441 = vadd.f32 0.0, %v440
        %v442 = vpop.f32.mrb[0].mxu0
        %v443 = vpop.f32.mrb[0].mxu0
        %v444 = vadd.f32 0.0, %v443
        %v445 = vpop.f32.mrb[0].mxu0
        %446 = vmatprep.mubr.bf16.mxu0 0
        %447 = vmatmul.mubr.bf16.gmra.mrb[0].mxu0 %v313
        %v448 = vpop.f32.mrb[0].mxu0
        %v449 = vadd.f32 0.0, %v448
        %v450 = vpop.f32.mrb[0].mxu0
        %v451 = vpop.f32.mrb[0].mxu0
        %v452 = vadd.f32 0.0, %v451
        %v453 = vpop.f32.mrb[0].mxu0
        %454 = vmatprep.mubr.bf16.mxu0 0
        %455 = vmatmul.mubr.bf16.gmra.mrb[0].mxu0 %v314
        %v456 = vpop.f32.mrb[0].mxu0
        %v457 = vadd.f32 0.0, %v456
        %v458 = vpop.f32.mrb[0].mxu0
        %v459 = vpop.f32.mrb[0].mxu0
        %v460 = vadd.f32 0.0, %v459
        %v461 = vpop.f32.mrb[0].mxu0
        %462 = vmatprep.mubr.bf16.mxu0 0
        %463 = vmatmul.mubr.bf16.gmra.mrb[0].mxu0 %v315
        %v464 = vpop.f32.mrb[0].mxu0
        %v465 = vadd.f32 0.0, %v464
        %v466 = vpop.f32.mrb[0].mxu0
        %v467 = vpop.f32.mrb[0].mxu0
        %v468 = vadd.f32 0.0, %v467
        %v469 = vpop.f32.mrb[0].mxu0
        %470 = vmatprep.mubr.bf16.mxu0 0
        %471 = vmatmul.mubr.bf16.gmra.mrb[0].mxu0 %v316
        %v472 = vpop.f32.mrb[0].mxu0
        %v473 = vadd.f32 0.0, %v472
        %v474 = vpop.f32.mrb[0].mxu0
        %v475 = vpop.f32.mrb[0].mxu0
        %v476 = vadd.f32 0.0, %v475
        %v477 = vpop.f32.mrb[0].mxu0
        %478 = vmatprep.mubr.bf16.mxu0 0
        %479 = vmatmul.mubr.bf16.gmra.mrb[0].mxu0 %v317
        %v480 = vpop.f32.mrb[0].mxu0
        %v481 = vadd.f32 0.0, %v480
        %v482 = vpop.f32.mrb[0].mxu0
        %v483 = vpop.f32.mrb[0].mxu0
        %v484 = vadd.f32 0.0, %v483
        %v485 = vpop.f32.mrb[0].mxu0
        %486 = vmatprep.mubr.bf16.mxu0 0
        %487 = vmatmul.mubr.bf16.gmra.mrb[0].mxu0 %v318
        %v488 = vpop.f32.mrb[0].mxu0
        %v489 = vadd.f32 0.0, %v488
        %v490 = vpop.f32.mrb[0].mxu0
        %v491 = vpop.f32.mrb[0].mxu0
        %v492 = vadd.f32 0.0, %v491
        %v493 = vpop.f32.mrb[0].mxu0
        %494 = vmatprep.mubr.bf16.mxu0 0
        %495 = vmatmul.mubr.bf16.gmra.mrb[0].mxu0 %v319
        %v496 = vpop.f32.mrb[0].mxu0
        %v497 = vadd.f32 0.0, %v496
        %v498 = vpop.f32.mrb[0].mxu0
        %v499 = vpop.f32.mrb[0].mxu0
        %v500 = vadd.f32 0.0, %v499
        %v501 = vpop.f32.mrb[0].mxu0
        %502 = vmatprep.mubr.bf16.mxu0 0
        %503 = vmatmul.mubr.bf16.gmra.mrb[0].mxu0 %v320
        %v504 = vpop.f32.mrb[0].mxu0
        %v505 = vadd.f32 0.0, %v504
        %v506 = vpop.f32.mrb[0].mxu0
        %v507 = vpop.f32.mrb[0].mxu0
        %v508 = vadd.f32 0.0, %v507
        %v509 = vpop.f32.mrb[0].mxu0
        %510 = vmatprep.mubr.bf16.mxu0 0
        %511 = vmatmul.mubr.bf16.gmra.mrb[0].mxu0 %v321
        %v512 = vpop.f32.mrb[0].mxu0
        %v513 = vadd.f32 0.0, %v512
        %v514 = vpop.f32.mrb[0].mxu0
        %v515 = vpop.f32.mrb[0].mxu0
        %v516 = vadd.f32 0.0, %v515
        %v517 = vpop.f32.mrb[0].mxu0
        %518 = vmatprep.mubr.bf16.mxu0 0
        %519 = vmatmul.mubr.bf16.gmra.mrb[0].mxu0 %v322
        %v520 = vpop.f32.mrb[0].mxu0
        %v521 = vadd.f32 0.0, %v520
        %v522 = vpop.f32.mrb[0].mxu0
        %v523 = vpop.f32.mrb[0].mxu0
        %v524 = vadd.f32 0.0, %v523
        %v525 = vpop.f32.mrb[0].mxu0
        %526 = vmatprep.mubr.bf16.mxu0 0
        %527 = vmatmul.mubr.bf16.gmra.mrb[0].mxu0 %v323
        %v528 = vpop.f32.mrb[0].mxu0
        %v529 = vadd.f32 0.0, %v528
        %v530 = vpop.f32.mrb[0].mxu0
        %v531 = vpop.f32.mrb[0].mxu0
        %v532 = vadd.f32 0.0, %v531
        %v533 = vpop.f32.mrb[0].mxu0
        %534 = vmatprep.mubr.bf16.mxu0 0
        %535 = vmatmul.mubr.bf16.gmra.mrb[0].mxu0 %v324
        %v536 = vpop.f32.mrb[0].mxu0
        %v537 = vadd.f32 0.0, %v536
        %v538 = vpop.f32.mrb[0].mxu0
        %v539 = vpop.f32.mrb[0].mxu0
        %v540 = vadd.f32 0.0, %v539
        %v541 = vpop.f32.mrb[0].mxu0
        %542 = vmatprep.mubr.bf16.mxu0 0
        %543 = vmatmul.mubr.bf16.gmra.mrb[0].mxu0 %v325
        %v544 = vpop.f32.mrb[0].mxu0
        %v545 = vadd.f32 0.0, %v544
        %v546 = vpop.f32.mrb[0].mxu0
        %v547 = vpop.f32.mrb[0].mxu0
        %v548 = vadd.f32 0.0, %v547
        %v549 = vpop.f32.mrb[0].mxu0
        %550 = vdwg.mxu0
        %551 = vst [vmem:[%s194] sm:$0xff] %v425
        %552 = vst [vmem:[%s194 + $0x8] sm:$0xff] %v428
        %553 = vst [vmem:[%s194 + $0x10] sm:$0xff] %v433
        %554 = vst [vmem:[%s194 + $0x18] sm:$0xff] %v436
        %555 = vst [vmem:[%s194 + $0x20] sm:$0xff] %v441
        %556 = vst [vmem:[%s194 + $0x28] sm:$0xff] %v444
        %557 = vst [vmem:[%s194 + $0x30] sm:$0xff] %v449
        %558 = vst [vmem:[%s194 + $0x38] sm:$0xff] %v452
        %559 = vst [vmem:[%s194 + $0x40] sm:$0xff] %v457
        %560 = vst [vmem:[%s194 + $0x48] sm:$0xff] %v460
        %561 = vst [vmem:[%s194 + $0x50] sm:$0xff] %v465
        %562 = vst [vmem:[%s194 + $0x58] sm:$0xff] %v468
        %563 = vst [vmem:[%s194 + $0x60] sm:$0xff] %v473
        %564 = vst [vmem:[%s194 + $0x68] sm:$0xff] %v476
        %565 = vst [vmem:[%s194 + $0x70] sm:$0xff] %v481
        %566 = vst [vmem:[%s194 + $0x78] sm:$0xff] %v484
        %567 = vst [vmem:[%s194 + $0x80] sm:$0xff] %v489
        %568 = vst [vmem:[%s194 + $0x88] sm:$0xff] %v492
        %569 = vst [vmem:[%s194 + $0x90] sm:$0xff] %v497
        %570 = vst [vmem:[%s194 + $0x98] sm:$0xff] %v500
        %571 = vst [vmem:[%s194 + $0xa0] sm:$0xff] %v505
        %572 = vst [vmem:[%s194 + $0xa8] sm:$0xff] %v508
        %573 = vst [vmem:[%s194 + $0xb0] sm:$0xff] %v513
        %574 = vst [vmem:[%s194 + $0xb8] sm:$0xff] %v516
        %575 = vst [vmem:[%s194 + $0xc0] sm:$0xff] %v521
        %576 = vst [vmem:[%s194 + $0xc8] sm:$0xff] %v524
        %577 = vst [vmem:[%s194 + $0xd0] sm:$0xff] %v529
        %578 = vst [vmem:[%s194 + $0xd8] sm:$0xff] %v532
        %579 = vst [vmem:[%s194 + $0xe0] sm:$0xff] %v537
        %580 = vst [vmem:[%s194 + $0xe8] sm:$0xff] %v540
        %581 = vst [vmem:[%s194 + $0xf0] sm:$0xff] %v545
        %582 = vst [vmem:[%s194 + $0xf8] sm:$0xff] %v548
        %s583 = sand.u32 %s91, 1
        %s584 = scalar_lea.sflag [#allocation4], %s583
        %s585 = sand.u32 %s91, 1
        %s586 = smul.addr %s585, 256
        %s587 = scalar_lea.vmem [#allocation7], %s586
        // Predicated region
        $region37: #{tpu_custom_call.1} parent=27 // pred_check
          %p588 = pneg %p101
        $region38: #{tpu_custom_call.1} parent=27 // pred_check_branch
          %590 = sbr.rel (%p588) target = $region40
        $region39: #{tpu_custom_call.1} parent=27 // pred_region
          %s591 = smul.u32 32, %s25
          %s593 = ssub.s32 4096, 4096
          %594 = vsyncadd %s584, %s593
          %s595 = smul.addr %s591, 2
          %s596 = sadd.s32 %s24, %s595
          %s597 = smul.addr %s596, 128
          %s598 = scalar_lea.hbm %s2, %s597
          %s599 = sshll.u32 %s587, 4
          %s600 = int_to_ptr.vmem [resolvable:$true] %s599
          %605 = dma.vmem_to_hbm [thread:$0]  %s600, 4096, %s598, %s584, 128, 256, 8
        $region40: #{tpu_custom_call.1} parent=27 // pred_fallthru
          _
      $region28: #{tpu_custom_call.1} parent=5 // pred_fallthru
        _
      %p606 = scmp.le.s32.totalorder 2, %s15
      // Predicated region
      $region41: #{tpu_custom_call.1} parent=5 // pred_check
        %p607 = pneg %p606
      $region42: #{tpu_custom_call.1} parent=5 // pred_check_branch
        %609 = sbr.rel (%p607) target = $region44
      $region43: #{tpu_custom_call.1} parent=5 // pred_region
        %s610 = ssub.s32 %s15, 2
        // Predicated region
        $region45: #{tpu_custom_call.1} parent=43 // pred_check
          %p611 = pneg %p107
        $region46: #{tpu_custom_call.1} parent=43 // pred_check_branch
          %613 = sbr.rel (%p611) target = $region48
        $region47: #{tpu_custom_call.1} parent=43 // pred_region
          %s614 = sand.u32 %s92, 1
          %s615 = scalar_lea.sflag [#allocation4], %s614
          %s616 = sand.u32 %s92, 1
          %s617 = smul.addr %s616, 256
          %s618 = scalar_lea.vmem [#allocation7], %s617
          %619 = dma.done %s615, 4096
        $region48: #{tpu_custom_call.1} parent=43 // pred_fallthru
          _
      $region44: #{tpu_custom_call.1} parent=5 // pred_fallthru
        _
    $region6: #{tpu_custom_call.1} parent=1 // loop_footer
      %s19 = sadd.s32 1, %s15
    $region7: #{tpu_custom_call.1} parent=1 // loop_footer_branch
      %14 = sbr.rel target = $region3
    $region8: #{tpu_custom_call.1} parent=1 // loop_exit
      _
    %620 = vsyncpa [#allocation3], 1
    %s621 = scalar_lea.sflag [#allocation3], 1
    %622 = vsyncpa %s621, 1
    %623 = vsyncpa [#allocation6], 1
    %624 = vsyncpa [#allocation4], 1
    %s625 = scalar_lea.sflag [#allocation4], 1
    %626 = vsyncpa %s625, 1

// kernel: tpu_custom_call.1
$region0: #{tpu_custom_call.1}
  #allocation0 [shape = 'u32[]', space=smem, size = 0x4, offset = 0x4, fixed_abs, tag = 'smem constant byte address 0x4 - core index']
  #allocation1 [shape = 'u32[144,128]{1,0:T(1,128)}', space=vmem, size = 0x12000, scoped, tag = 'internal scratch']
  %s0 = inlined_call_operand.hbm [shape: bf16[2,32,8,128], index: 0, kind: input, shape index: {}]
  %s1 = inlined_call_operand.hbm [shape: bf16[128,128], index: 1, kind: input, shape index: {}]
  %s2 = inlined_call_operand.hbm [shape: f32[32,2,8,128], index: 2, kind: output, shape index: {}]
  %s3 = sld [smem:[#allocation0]]
  $region49: #{tpu_custom_call.1} parent=0
    _
  %s5 = ssub.s32 1, %s3
  %s6 = scalar_select 0, %s5, %s3
  $region1: #{tpu_custom_call.1} parent=0
    #allocation2 [shape = 'u8[131072]{0}', space=vmem, size = 0x20000, scoped, tag = 'input window, operand 0']
    #allocation3 [shape = 's32[2]{0}', space=sflag, size = 0x8, scoped, tag = 'scoped memory for tpu_custom_call.1']
    #allocation4 [shape = 's32[2]{0}', space=sflag, size = 0x8, scoped, tag = 'scoped memory for tpu_custom_call.1']
    #allocation5 [shape = 'u8[32768]{0}', space=vmem, size = 0x8000, scoped, tag = 'input window, operand 1, single buffered']
    #allocation6 [shape = 's32[1]{0}', space=sflag, size = 0x4, scoped, tag = 'scoped memory for tpu_custom_call.1']
    #allocation7 [shape = 'u8[262144]{0}', space=vmem, size = 0x40000, scoped, tag = 'output window, operand 0']
    %7 = vsyncpa [#allocation3], 0
    %s8 = scalar_lea.sflag [#allocation3], 1
    %9 = vsyncpa %s8, 0
    %10 = vsyncpa [#allocation6], 0
    %11 = vsyncpa [#allocation4], 0
    %s12 = scalar_lea.sflag [#allocation4], 1
    %13 = vsyncpa %s12, 0
    loop: start=0, step=1, limit=4
    $region2: #{tpu_custom_call.1} parent=1 // loop_pre_header
      _
    $region3: #{tpu_custom_call.1} parent=1 // loop_header
      %s15 = sphi 0, %s19
      %p16 = scmp.ge.s32.totalorder %s15, 4
      %s22 = sphi 0, %s34
      %s23 = sphi 0, %s30
      %s24 = sphi 0, %s22
      %s25 = sphi 0, %s23
      %s26 = sphi 0, %s24
      %s27 = sphi 0, %s25
      %s39 = sphi 0, %s41
      %s42 = sphi 0, %s39
      %s43 = sphi 0, %s42
      %s59 = sphi 0, %s43
      %s63 = sphi 0, %s63
      %s65 = sphi 0, %s63
      %s66 = sphi 0, %s65
      %s80 = sphi 0, %s66
      %s88 = sphi 0, %s90
      %s91 = sphi 0, %s88
      %s92 = sphi 0, %s91
      %s108 = sphi 0, %s92
    $region4: #{tpu_custom_call.1} parent=1 // loop_header_branch
      %18 = sbr.rel (%p16) target = $region8
    $region5: #{tpu_custom_call.1} parent=1 // loop_body
      %s20 = ssub.s32 %s15, 1
      %s21 = ssub.s32 %s15, 2
      %s28 = sadd.s32 1, %s23
      %p29 = scmp.ge.s32.totalorder %s28, 1
      %s30 = scalar_select %p29, 0, %s28
      %s31 = sadd.s32 1, %s22
      %s32 = scalar_select %p29, %s31, %s22
      %p33 = scmp.ge.s32.totalorder %s32, 2
      %s34 = scalar_select %p33, 0, %s32
      %s35 = ssub.s32 %s22, %s34
      %s36 = ssub.s32 %s23, %s30
      %s37 = sor.u32 %s35, %s36
      %p38 = scmp.eq.s32.totalorder %s37, 0
      %s40 = sadd.s32 %s39, 1
      %s41 = scalar_select %p38, %s39, %s40
      %p44 = pneg %p38
      %p45 = scmp.eq.s32.totalorder %s15, 1
      %p46 = por %p44, %p45
      %p47 = scmp.ne.s32.totalorder %s39, %s42
      %p48 = scmp.eq.s32.totalorder %s15, 0
      %p49 = por %p47, %p48
      %p50 = scmp.ne.s32.totalorder %s39, %s42
      %p51 = scmp.eq.s32.totalorder %s20, 1
      %p52 = por %p50, %p51
      %p53 = scmp.ne.s32.totalorder %s42, %s43
      %p54 = scmp.eq.s32.totalorder %s20, 0
      %p55 = por %p53, %p54
      %p56 = scmp.ne.s32.totalorder %s42, %s43
      %p57 = scmp.eq.s32.totalorder %s21, 1
      %p58 = por %p56, %p57
      %p60 = scmp.ne.s32.totalorder %s43, %s59
      %p61 = scmp.eq.s32.totalorder %s21, 0
      %p62 = por %p60, %p61
      %s64 = sadd.s32 %s63, 1
      %p67 = scmp.eq.s32.totalorder %s15, 1
      %p68 = scmp.ne.s32.totalorder %s63, %s65
      %p69 = scmp.eq.s32.totalorder %s15, 0
      %p70 = por %p68, %p69
      %p71 = scmp.ne.s32.totalorder %s63, %s65
      %p72 = scmp.eq.s32.totalorder %s20, 1
      %p73 = por %p71, %p72
      %p74 = scmp.ne.s32.totalorder %s65, %s66
      %p75 = scmp.eq.s32.totalorder %s20, 0
      %p76 = por %p74, %p75
      %p77 = scmp.ne.s32.totalorder %s65, %s66
      %p78 = scmp.eq.s32.totalorder %s21, 1
      %p79 = por %p77, %p78
      %p81 = scmp.ne.s32.totalorder %s66, %s80
      %p82 = scmp.eq.s32.totalorder %s21, 0
      %p83 = por %p81, %p82
      %s84 = ssub.s32 %s23, %s30
      %s85 = ssub.s32 %s22, %s34
      %s86 = sor.u32 %s84, %s85
      %p87 = scmp.eq.s32.totalorder %s86, 0
      %s89 = sadd.s32 %s88, 1
      %s90 = scalar_select %p87, %s88, %s89
      %p93 = pneg %p87
      %p94 = scmp.eq.s32.totalorder %s15, 1
      %p95 = por %p93, %p94
      %p96 = scmp.ne.s32.totalorder %s88, %s91
      %p97 = scmp.eq.s32.totalorder %s15, 0
      %p98 = por %p96, %p97
      %p99 = scmp.ne.s32.totalorder %s88, %s91
      %p100 = scmp.eq.s32.totalorder %s20, 1
      %p101 = por %p99, %p100
      %p102 = scmp.ne.s32.totalorder %s91, %s92
      %p103 = scmp.eq.s32.totalorder %s20, 0
      %p104 = por %p102, %p103
      %p105 = scmp.ne.s32.totalorder %s91, %s92
      %p106 = scmp.eq.s32.totalorder %s21, 1
      %p107 = por %p105, %p106
      %p109 = scmp.ne.s32.totalorder %s92, %s108
      %p110 = scmp.eq.s32.totalorder %s21, 0
      %p111 = por %p109, %p110
      %p112 = scmp.le.s32.totalorder 1, %s15
      %p113 = scmp.lt.s32.totalorder %s15, 3
      %p114 = pnand %p112, %p113
      %p115 = pneg %p114
      // Predicated region
      $region9: #{tpu_custom_call.1} parent=5 // pred_check
        _
      $region10: #{tpu_custom_call.1} parent=5 // pred_check_branch
        %117 = sbr.rel (%p114) target = $region12
      $region11: #{tpu_custom_call.1} parent=5 // pred_region
        %s118 = ssub.s32 %s15, 1
        // Predicated region
        $region13: #{tpu_custom_call.1} parent=11 // pred_check
          %p119 = pneg %p76
        $region14: #{tpu_custom_call.1} parent=11 // pred_check_branch
          %121 = sbr.rel (%p119) target = $region16
        $region15: #{tpu_custom_call.1} parent=11 // pred_region
          %s123 = ssub.s32 1024, 1024
          %124 = vsyncadd [#allocation6], %s123
          %s125 = sshll.u32 [#allocation5], 4
          %s126 = int_to_ptr.vmem [resolvable:$true] %s125
          %131 = dma.hbm_to_vmem [thread:$0]  %s1, 1024, %s126, [#allocation6], 64, 64, 4
        $region16: #{tpu_custom_call.1} parent=11 // pred_fallthru
          _
      $region12: #{tpu_custom_call.1} parent=5 // pred_fallthru
        _
      %p132 = scmp.lt.s32.totalorder %s15, 2
      // Predicated region
      $region17: #{tpu_custom_call.1} parent=5 // pred_check
        %p133 = pneg %p132
      $region18: #{tpu_custom_call.1} parent=5 // pred_check_branch
        %135 = sbr.rel (%p133) target = $region20
      $region19: #{tpu_custom_call.1} parent=5 // pred_region
        // Predicated region
        $region21: #{tpu_custom_call.1} parent=19 // pred_check
          %p136 = pneg %p49
        $region22: #{tpu_custom_call.1} parent=19 // pred_check_branch
          %138 = sbr.rel (%p136) target = $region24
        $region23: #{tpu_custom_call.1} parent=19 // pred_region
          %s139 = sand.u32 %s39, 1
          %s140 = scalar_lea.sflag [#allocation3], %s139
          %s141 = sand.u32 %s39, 1
          %s142 = smul.addr %s141, 128
          %s143 = scalar_lea.vmem [#allocation2], %s142
          %s144 = smul.u32 32, %s23
          %s146 = ssub.s32 2048, 2048
          %147 = vsyncadd %s140, %s146
          %s148 = smul.addr %s22, 32
          %s149 = sadd.s32 %s144, %s148
          %s150 = smul.addr %s149, 64
          %s151 = scalar_lea.hbm %s0, %s150
          %s152 = sshll.u32 %s143, 4
          %s153 = int_to_ptr.vmem [resolvable:$true] %s152
          %158 = dma.hbm_to_vmem [thread:$0]  %s151, 2048, %s153, %s140, 64, 64, 4
        $region24: #{tpu_custom_call.1} parent=19 // pred_fallthru
          _
      $region20: #{tpu_custom_call.1} parent=5 // pred_fallthru
        _
      %p159 = scmp.le.s32.totalorder 1, %s15
      %p160 = scmp.lt.s32.totalorder %s15, 3
      %p161 = pnand %p159, %p160
      %p162 = pneg %p161
      // Predicated region
      $region25: #{tpu_custom_call.1} parent=5 // pred_check
        _
      $region26: #{tpu_custom_call.1} parent=5 // pred_check_branch
        %164 = sbr.rel (%p161) target = $region28
      $region27: #{tpu_custom_call.1} parent=5 // pred_region
        %s165 = ssub.s32 %s15, 1
        %s166 = sand.u32 %s42, 1
        %s167 = scalar_lea.sflag [#allocation3], %s166
        %s168 = sand.u32 %s42, 1
        %s169 = smul.addr %s168, 128
        %s170 = scalar_lea.vmem [#allocation2], %s169
        // Predicated region
        $region29: #{tpu_custom_call.1} parent=27 // pred_check
          %p171 = pneg %p55
        $region30: #{tpu_custom_call.1} parent=27 // pred_check_branch
          %173 = sbr.rel (%p171) target = $region32
        $region31: #{tpu_custom_call.1} parent=27 // pred_region
          %174 = dma.done %s167, 2048
        $region32: #{tpu_custom_call.1} parent=27 // pred_fallthru
          _
        // Predicated region
        $region33: #{tpu_custom_call.1} parent=27 // pred_check
          %p175 = pneg %p76
        $region34: #{tpu_custom_call.1} parent=27 // pred_check_branch
          %177 = sbr.rel (%p175) target = $region36
        $region35: #{tpu_custom_call.1} parent=27 // pred_region
          %178 = dma.done [#allocation6], 1024
        $region36: #{tpu_custom_call.1} parent=27 // pred_fallthru
          _
        %s179 = sand.u32 %s42, 1
        %s180 = scalar_lea.sflag [#allocation3], %s179
        %s181 = sand.u32 %s42, 1
        %s182 = smul.addr %s181, 128
        %s183 = scalar_lea.vmem [#allocation2], %s182
        %p184 = pneg %p55
        %p185 = pneg %p52
        %p186 = pneg %p76
        %p187 = pneg %p73
        %p188 = pneg %p104
        %p189 = pneg %p101
        %s190 = sand.u32 %s91, 1
        %s191 = scalar_lea.sflag [#allocation4], %s190
        %s192 = sand.u32 %s91, 1
        %s193 = smul.addr %s192, 256
        %s194 = scalar_lea.vmem [#allocation7], %s193
        %s195 = smul.u32 32, %s25
        %s196 = smul.u32 32, %s25
        %v198 = vld [vmem:[%s170] sm:$0xf]
        %v199 = vld [vmem:[%s170 + $0x4] sm:$0xf]
        %v200 = vld [vmem:[%s170 + $0x8] sm:$0xf]
        %v201 = vld [vmem:[%s170 + $0xc] sm:$0xf]
        %v202 = vld [vmem:[%s170 + $0x10] sm:$0xf]
        %v203 = vld [vmem:[%s170 + $0x14] sm:$0xf]
        %v204 = vld [vmem:[%s170 + $0x18] sm:$0xf]
        %v205 = vld [vmem:[%s170 + $0x1c] sm:$0xf]
        %v206 = vld [vmem:[%s170 + $0x20] sm:$0xf]
        %v207 = vld [vmem:[%s170 + $0x24] sm:$0xf]
        %v208 = vld [vmem:[%s170 + $0x28] sm:$0xf]
        %v209 = vld [vmem:[%s170 + $0x2c] sm:$0xf]
        %v210 = vld [vmem:[%s170 + $0x30] sm:$0xf]
        %v211 = vld [vmem:[%s170 + $0x34] sm:$0xf]
        %v212 = vld [vmem:[%s170 + $0x38] sm:$0xf]
        %v213 = vld [vmem:[%s170 + $0x3c] sm:$0xf]
        %v214 = vld [vmem:[%s170 + $0x40] sm:$0xf]
        %v215 = vld [vmem:[%s170 + $0x44] sm:$0xf]
        %v216 = vld [vmem:[%s170 + $0x48] sm:$0xf]
        %v217 = vld [vmem:[%s170 + $0x4c] sm:$0xf]
        %v218 = vld [vmem:[%s170 + $0x50] sm:$0xf]
        %v219 = vld [vmem:[%s170 + $0x54] sm:$0xf]
        %v220 = vld [vmem:[%s170 + $0x58] sm:$0xf]
        %v221 = vld [vmem:[%s170 + $0x5c] sm:$0xf]
        %v222 = vld [vmem:[%s170 + $0x60] sm:$0xf]
        %v223 = vld [vmem:[%s170 + $0x64] sm:$0xf]
        %v224 = vld [vmem:[%s170 + $0x68] sm:$0xf]
        %v225 = vld [vmem:[%s170 + $0x6c] sm:$0xf]
        %v226 = vld [vmem:[%s170 + $0x70] sm:$0xf]
        %v227 = vld [vmem:[%s170 + $0x74] sm:$0xf]
        %v228 = vld [vmem:[%s170 + $0x78] sm:$0xf]
        %v229 = vld [vmem:[%s170 + $0x7c] sm:$0xf]
        %v230 = vld [vmem:[#allocation5] sm:$0xf]
        %v231 = vld [vmem:[#allocation5 + $0x4] sm:$0xf]
        %v232 = vld [vmem:[#allocation5 + $0x8] sm:$0xf]
        %v233 = vld [vmem:[#allocation5 + $0xc] sm:$0xf]
        %v234 = vld [vmem:[#allocation5 + $0x10] sm:$0xf]
        %v235 = vld [vmem:[#allocation5 + $0x14] sm:$0xf]
        %v236 = vld [vmem:[#allocation5 + $0x18] sm:$0xf]
        %v237 = vld [vmem:[#allocation5 + $0x1c] sm:$0xf]
        %v238 = vld [vmem:[#allocation5 + $0x20] sm:$0xf]
        %v239 = vld [vmem:[#allocation5 + $0x24] sm:$0xf]
        %v240 = vld [vmem:[#allocation5 + $0x28] sm:$0xf]
        %v241 = vld [vmem:[#allocation5 + $0x2c] sm:$0xf]
        %v242 = vld [vmem:[#allocation5 + $0x30] sm:$0xf]
        %v243 = vld [vmem:[#allocation5 + $0x34] sm:$0xf]
        %v244 = vld [vmem:[#allocation5 + $0x38] sm:$0xf]
        %v245 = vld [vmem:[#allocation5 + $0x3c] sm:$0xf]
        %v278 = vunpack.c.l.b16 %v198
        %v279 = vunpack.c.l.b16 %v199
        %v280 = vunpack.c.l.b16 %v200
        %v281 = vunpack.c.l.b16 %v201
        %v282 = vunpack.c.l.b16 %v202
        %v283 = vunpack.c.l.b16 %v203
        %v284 = vunpack.c.l.b16 %v204
        %v285 = vunpack.c.l.b16 %v205
        %v286 = vunpack.c.l.b16 %v206
        %v287 = vunpack.c.l.b16 %v207
        %v288 = vunpack.c.l.b16 %v208
        %v289 = vunpack.c.l.b16 %v209
        %v290 = vunpack.c.l.b16 %v210
        %v291 = vunpack.c.l.b16 %v211
        %v292 = vunpack.c.l.b16 %v212
        %v293 = vunpack.c.l.b16 %v213
        %v294 = vunpack.c.l.b16 %v214
        %v295 = vunpack.c.l.b16 %v215
        %v296 = vunpack.c.l.b16 %v216
        %v297 = vunpack.c.l.b16 %v217
        %v298 = vunpack.c.l.b16 %v218
        %v299 = vunpack.c.l.b16 %v219
        %v300 = vunpack.c.l.b16 %v220
        %v301 = vunpack.c.l.b16 %v221
        %v302 = vunpack.c.l.b16 %v222
        %v303 = vunpack.c.l.b16 %v223
        %v304 = vunpack.c.l.b16 %v224
        %v305 = vunpack.c.l.b16 %v225
        %v306 = vunpack.c.l.b16 %v226
        %v307 = vunpack.c.l.b16 %v227
        %v308 = vunpack.c.l.b16 %v228
        %v309 = vunpack.c.l.b16 %v229
        %v310 = vpack.c.b16 %v279, %v278
        %v311 = vpack.c.b16 %v281, %v280
        %v312 = vpack.c.b16 %v283, %v282
        %v313 = vpack.c.b16 %v285, %v284
        %v314 = vpack.c.b16 %v287, %v286
        %v315 = vpack.c.b16 %v289, %v288
        %v316 = vpack.c.b16 %v291, %v290
        %v317 = vpack.c.b16 %v293, %v292
        %v318 = vpack.c.b16 %v295, %v294
        %v319 = vpack.c.b16 %v297, %v296
        %v320 = vpack.c.b16 %v299, %v298
        %v321 = vpack.c.b16 %v301, %v300
        %v322 = vpack.c.b16 %v303, %v302
        %v323 = vpack.c.b16 %v305, %v304
        %v324 = vpack.c.b16 %v307, %v306
        %v325 = vpack.c.b16 %v309, %v308
        %v358 = vunpack.c.l.b16 %v230
        %v359 = vunpack.c.l.b16 %v231
        %v360 = vunpack.c.l.b16 %v232
        %v361 = vunpack.c.l.b16 %v233
        %v362 = vunpack.c.l.b16 %v234
        %v363 = vunpack.c.l.b16 %v235
        %v364 = vunpack.c.l.b16 %v236
        %v365 = vunpack.c.l.b16 %v237
        %v366 = vunpack.c.l.b16 %v238
        %v367 = vunpack.c.l.b16 %v239
        %v368 = vunpack.c.l.b16 %v240
        %v369 = vunpack.c.l.b16 %v241
        %v370 = vunpack.c.l.b16 %v242
        %v371 = vunpack.c.l.b16 %v243
        %v372 = vunpack.c.l.b16 %v244
        %v373 = vunpack.c.l.b16 %v245
        %v374 = vpack.c.b16 %v359, %v358
        %v375 = vpack.c.b16 %v361, %v360
        %v376 = vpack.c.b16 %v363, %v362
        %v377 = vpack.c.b16 %v365, %v364
        %v378 = vpack.c.b16 %v367, %v366
        %v379 = vpack.c.b16 %v369, %v368
        %v380 = vpack.c.b16 %v371, %v370
        %v381 = vpack.c.b16 %v373, %v372
        %390 = vmatprep.subr.bf16.mxu0 0
        %391 = vmatpush1.bf16.msra.mxu0 %v374
        %392 = vmatprep.subr.bf16.mxu0 0
        %393 = vmatpush1.bf16.msra.mxu0 %v375
        %394 = vmatprep.subr.bf16.mxu0 0
        %395 = vmatpush1.bf16.msra.mxu0 %v376
        %396 = vmatprep.subr.bf16.mxu0 0
        %397 = vmatpush1.bf16.msra.mxu0 %v377
        %398 = vmatprep.subr.bf16.mxu0 0
        %399 = vmatpush1.bf16.msra.mxu0 %v378
        %400 = vmatprep.subr.bf16.mxu0 0
        %401 = vmatpush1.bf16.msra.mxu0 %v379
        %402 = vmatprep.subr.bf16.mxu0 0
        %403 = vmatpush1.bf16.msra.mxu0 %v380
        %404 = vmatprep.subr.bf16.mxu0 0
        %405 = vmatpush1.bf16.msra.mxu0 %v381
        %406 = vmatprep.subr.bf16.mxu0 0
        %407 = vmatpush1.bf16.msra.mxu0 0
        %408 = vmatprep.subr.bf16.mxu0 0
        %409 = vmatpush1.bf16.msra.mxu0 0
        %410 = vmatprep.subr.bf16.mxu0 0
        %411 = vmatpush1.bf16.msra.mxu0 0
        %412 = vmatprep.subr.bf16.mxu0 0
        %413 = vmatpush1.bf16.msra.mxu0 0
        %414 = vmatprep.subr.bf16.mxu0 0
        %415 = vmatpush1.bf16.msra.mxu0 0
        %416 = vmatprep.subr.bf16.mxu0 0
        %417 = vmatpush1.bf16.msra.mxu0 0
        %418 = vmatprep.subr.bf16.mxu0 0
        %419 = vmatpush1.bf16.msra.mxu0 0
        %420 = vmatprep.subr.bf16.mxu0 0
        %421 = vmatpush1.bf16.msra.mxu0 0
        %422 = vmatprep.mubr.bf16.mxu0 0
        %423 = vmatmul.mubr.bf16.gmra.mrb[0].mxu0 %v310
        %v424 = vpop.f32.mrb[0].mxu0
        %v425 = vadd.f32 0.0, %v424
        %v426 = vpop.f32.mrb[0].mxu0
        %v427 = vpop.f32.mrb[0].mxu0
        %v428 = vadd.f32 0.0, %v427
        %v429 = vpop.f32.mrb[0].mxu0
        %430 = vmatprep.mubr.bf16.mxu0 0
        %431 = vmatmul.mubr.bf16.gmra.mrb[0].mxu0 %v311
        %v432 = vpop.f32.mrb[0].mxu0
        %v433 = vadd.f32 0.0, %v432
        %v434 = vpop.f32.mrb[0].mxu0
        %v435 = vpop.f32.mrb[0].mxu0
        %v436 = vadd.f32 0.0, %v435
        %v437 = vpop.f32.mrb[0].mxu0
        %438 = vmatprep.mubr.bf16.mxu0 0
        %439 = vmatmul.mubr.bf16.gmra.mrb[0].mxu0 %v312
        %v440 = vpop.f32.mrb[0].mxu0
        %v441 = vadd.f32 0.0, %v440
        %v442 = vpop.f32.mrb[0].mxu0
        %v443 = vpop.f32.mrb[0].mxu0
        %v444 = vadd.f32 0.0, %v443
        %v445 = vpop.f32.mrb[0].mxu0
        %446 = vmatprep.mubr.bf16.mxu0 0
        %447 = vmatmul.mubr.bf16.gmra.mrb[0].mxu0 %v313
        %v448 = vpop.f32.mrb[0].mxu0
        %v449 = vadd.f32 0.0, %v448
        %v450 = vpop.f32.mrb[0].mxu0
        %v451 = vpop.f32.mrb[0].mxu0
        %v452 = vadd.f32 0.0, %v451
        %v453 = vpop.f32.mrb[0].mxu0
        %454 = vmatprep.mubr.bf16.mxu0 0
        %455 = vmatmul.mubr.bf16.gmra.mrb[0].mxu0 %v314
        %v456 = vpop.f32.mrb[0].mxu0
        %v457 = vadd.f32 0.0, %v456
        %v458 = vpop.f32.mrb[0].mxu0
        %v459 = vpop.f32.mrb[0].mxu0
        %v460 = vadd.f32 0.0, %v459
        %v461 = vpop.f32.mrb[0].mxu0
        %462 = vmatprep.mubr.bf16.mxu0 0
        %463 = vmatmul.mubr.bf16.gmra.mrb[0].mxu0 %v315
        %v464 = vpop.f32.mrb[0].mxu0
        %v465 = vadd.f32 0.0, %v464
        %v466 = vpop.f32.mrb[0].mxu0
        %v467 = vpop.f32.mrb[0].mxu0
        %v468 = vadd.f32 0.0, %v467
        %v469 = vpop.f32.mrb[0].mxu0
        %470 = vmatprep.mubr.bf16.mxu0 0
        %471 = vmatmul.mubr.bf16.gmra.mrb[0].mxu0 %v316
        %v472 = vpop.f32.mrb[0].mxu0
        %v473 = vadd.f32 0.0, %v472
        %v474 = vpop.f32.mrb[0].mxu0
        %v475 = vpop.f32.mrb[0].mxu0
        %v476 = vadd.f32 0.0, %v475
        %v477 = vpop.f32.mrb[0].mxu0
        %478 = vmatprep.mubr.bf16.mxu0 0
        %479 = vmatmul.mubr.bf16.gmra.mrb[0].mxu0 %v317
        %v480 = vpop.f32.mrb[0].mxu0
        %v481 = vadd.f32 0.0, %v480
        %v482 = vpop.f32.mrb[0].mxu0
        %v483 = vpop.f32.mrb[0].mxu0
        %v484 = vadd.f32 0.0, %v483
        %v485 = vpop.f32.mrb[0].mxu0
        %486 = vmatprep.mubr.bf16.mxu0 0
        %487 = vmatmul.mubr.bf16.gmra.mrb[0].mxu0 %v318
        %v488 = vpop.f32.mrb[0].mxu0
        %v489 = vadd.f32 0.0, %v488
        %v490 = vpop.f32.mrb[0].mxu0
        %v491 = vpop.f32.mrb[0].mxu0
        %v492 = vadd.f32 0.0, %v491
        %v493 = vpop.f32.mrb[0].mxu0
        %494 = vmatprep.mubr.bf16.mxu0 0
        %495 = vmatmul.mubr.bf16.gmra.mrb[0].mxu0 %v319
        %v496 = vpop.f32.mrb[0].mxu0
        %v497 = vadd.f32 0.0, %v496
        %v498 = vpop.f32.mrb[0].mxu0
        %v499 = vpop.f32.mrb[0].mxu0
        %v500 = vadd.f32 0.0, %v499
        %v501 = vpop.f32.mrb[0].mxu0
        %502 = vmatprep.mubr.bf16.mxu0 0
        %503 = vmatmul.mubr.bf16.gmra.mrb[0].mxu0 %v320
        %v504 = vpop.f32.mrb[0].mxu0
        %v505 = vadd.f32 0.0, %v504
        %v506 = vpop.f32.mrb[0].mxu0
        %v507 = vpop.f32.mrb[0].mxu0
        %v508 = vadd.f32 0.0, %v507
        %v509 = vpop.f32.mrb[0].mxu0
        %510 = vmatprep.mubr.bf16.mxu0 0
        %511 = vmatmul.mubr.bf16.gmra.mrb[0].mxu0 %v321
        %v512 = vpop.f32.mrb[0].mxu0
        %v513 = vadd.f32 0.0, %v512
        %v514 = vpop.f32.mrb[0].mxu0
        %v515 = vpop.f32.mrb[0].mxu0
        %v516 = vadd.f32 0.0, %v515
        %v517 = vpop.f32.mrb[0].mxu0
        %518 = vmatprep.mubr.bf16.mxu0 0
        %519 = vmatmul.mubr.bf16.gmra.mrb[0].mxu0 %v322
        %v520 = vpop.f32.mrb[0].mxu0
        %v521 = vadd.f32 0.0, %v520
        %v522 = vpop.f32.mrb[0].mxu0
        %v523 = vpop.f32.mrb[0].mxu0
        %v524 = vadd.f32 0.0, %v523
        %v525 = vpop.f32.mrb[0].mxu0
        %526 = vmatprep.mubr.bf16.mxu0 0
        %527 = vmatmul.mubr.bf16.gmra.mrb[0].mxu0 %v323
        %v528 = vpop.f32.mrb[0].mxu0
        %v529 = vadd.f32 0.0, %v528
        %v530 = vpop.f32.mrb[0].mxu0
        %v531 = vpop.f32.mrb[0].mxu0
        %v532 = vadd.f32 0.0, %v531
        %v533 = vpop.f32.mrb[0].mxu0
        %534 = vmatprep.mubr.bf16.mxu0 0
        %535 = vmatmul.mubr.bf16.gmra.mrb[0].mxu0 %v324
        %v536 = vpop.f32.mrb[0].mxu0
        %v537 = vadd.f32 0.0, %v536
        %v538 = vpop.f32.mrb[0].mxu0
        %v539 = vpop.f32.mrb[0].mxu0
        %v540 = vadd.f32 0.0, %v539
        %v541 = vpop.f32.mrb[0].mxu0
        %542 = vmatprep.mubr.bf16.mxu0 0
        %543 = vmatmul.mubr.bf16.gmra.mrb[0].mxu0 %v325
        %v544 = vpop.f32.mrb[0].mxu0
        %v545 = vadd.f32 0.0, %v544
        %v546 = vpop.f32.mrb[0].mxu0
        %v547 = vpop.f32.mrb[0].mxu0
        %v548 = vadd.f32 0.0, %v547
        %v549 = vpop.f32.mrb[0].mxu0
        %550 = vdwg.mxu0
        %551 = vst [vmem:[%s194] sm:$0xff] %v425
        %552 = vst [vmem:[%s194 + $0x8] sm:$0xff] %v428
        %553 = vst [vmem:[%s194 + $0x10] sm:$0xff] %v433
        %554 = vst [vmem:[%s194 + $0x18] sm:$0xff] %v436
        %555 = vst [vmem:[%s194 + $0x20] sm:$0xff] %v441
        %556 = vst [vmem:[%s194 + $0x28] sm:$0xff] %v444
        %557 = vst [vmem:[%s194 + $0x30] sm:$0xff] %v449
        %558 = vst [vmem:[%s194 + $0x38] sm:$0xff] %v452
        %559 = vst [vmem:[%s194 + $0x40] sm:$0xff] %v457
        %560 = vst [vmem:[%s194 + $0x48] sm:$0xff] %v460
        %561 = vst [vmem:[%s194 + $0x50] sm:$0xff] %v465
        %562 = vst [vmem:[%s194 + $0x58] sm:$0xff] %v468
        %563 = vst [vmem:[%s194 + $0x60] sm:$0xff] %v473
        %564 = vst [vmem:[%s194 + $0x68] sm:$0xff] %v476
        %565 = vst [vmem:[%s194 + $0x70] sm:$0xff] %v481
        %566 = vst [vmem:[%s194 + $0x78] sm:$0xff] %v484
        %567 = vst [vmem:[%s194 + $0x80] sm:$0xff] %v489
        %568 = vst [vmem:[%s194 + $0x88] sm:$0xff] %v492
        %569 = vst [vmem:[%s194 + $0x90] sm:$0xff] %v497
        %570 = vst [vmem:[%s194 + $0x98] sm:$0xff] %v500
        %571 = vst [vmem:[%s194 + $0xa0] sm:$0xff] %v505
        %572 = vst [vmem:[%s194 + $0xa8] sm:$0xff] %v508
        %573 = vst [vmem:[%s194 + $0xb0] sm:$0xff] %v513
        %574 = vst [vmem:[%s194 + $0xb8] sm:$0xff] %v516
        %575 = vst [vmem:[%s194 + $0xc0] sm:$0xff] %v521
        %576 = vst [vmem:[%s194 + $0xc8] sm:$0xff] %v524
        %577 = vst [vmem:[%s194 + $0xd0] sm:$0xff] %v529
        %578 = vst [vmem:[%s194 + $0xd8] sm:$0xff] %v532
        %579 = vst [vmem:[%s194 + $0xe0] sm:$0xff] %v537
        %580 = vst [vmem:[%s194 + $0xe8] sm:$0xff] %v540
        %581 = vst [vmem:[%s194 + $0xf0] sm:$0xff] %v545
        %582 = vst [vmem:[%s194 + $0xf8] sm:$0xff] %v548
        %s583 = sand.u32 %s91, 1
        %s584 = scalar_lea.sflag [#allocation4], %s583
        %s585 = sand.u32 %s91, 1
        %s586 = smul.addr %s585, 256
        %s587 = scalar_lea.vmem [#allocation7], %s586
        // Predicated region
        $region37: #{tpu_custom_call.1} parent=27 // pred_check
          %p588 = pneg %p101
        $region38: #{tpu_custom_call.1} parent=27 // pred_check_branch
          %590 = sbr.rel (%p588) target = $region40
        $region39: #{tpu_custom_call.1} parent=27 // pred_region
          %s591 = smul.u32 32, %s25
          %s593 = ssub.s32 4096, 4096
          %594 = vsyncadd %s584, %s593
          %s595 = smul.addr %s591, 2
          %s596 = sadd.s32 %s24, %s595
          %s597 = smul.addr %s596, 128
          %s598 = scalar_lea.hbm %s2, %s597
          %s599 = sshll.u32 %s587, 4
          %s600 = int_to_ptr.vmem [resolvable:$true] %s599
          %605 = dma.vmem_to_hbm [thread:$0]  %s600, 4096, %s598, %s584, 128, 256, 8
        $region40: #{tpu_custom_call.1} parent=27 // pred_fallthru
          _
      $region28: #{tpu_custom_call.1} parent=5 // pred_fallthru
        _
      %p606 = scmp.le.s32.totalorder 2, %s15
      // Predicated region
      $region41: #{tpu_custom_call.1} parent=5 // pred_check
        %p607 = pneg %p606
      $region42: #{tpu_custom_call.1} parent=5 // pred_check_branch
        %609 = sbr.rel (%p607) target = $region44
      $region43: #{tpu_custom_call.1} parent=5 // pred_region
        %s610 = ssub.s32 %s15, 2
        // Predicated region
        $region45: #{tpu_custom_call.1} parent=43 // pred_check
          %p611 = pneg %p107
        $region46: #{tpu_custom_call.1} parent=43 // pred_check_branch
          %613 = sbr.rel (%p611) target = $region48
        $region47: #{tpu_custom_call.1} parent=43 // pred_region
          %s614 = sand.u32 %s92, 1
          %s615 = scalar_lea.sflag [#allocation4], %s614
          %s616 = sand.u32 %s92, 1
          %s617 = smul.addr %s616, 256
          %s618 = scalar_lea.vmem [#allocation7], %s617
          %619 = dma.done %s615, 4096
        $region48: #{tpu_custom_call.1} parent=43 // pred_fallthru
          _
      $region44: #{tpu_custom_call.1} parent=5 // pred_fallthru
        _
    $region6: #{tpu_custom_call.1} parent=1 // loop_footer
      %s19 = sadd.s32 1, %s15
    $region7: #{tpu_custom_call.1} parent=1 // loop_footer_branch
      %14 = sbr.rel target = $region3
    $region8: #{tpu_custom_call.1} parent=1 // loop_exit
      _
    %620 = vsyncpa [#allocation3], 1
    %s621 = scalar_lea.sflag [#allocation3], 1
    %622 = vsyncpa %s621, 1
    %623 = vsyncpa [#allocation6], 1
    %624 = vsyncpa [#allocation4], 1
    %s625 = scalar_lea.sflag [#allocation4], 1
    %626 = vsyncpa %s625, 1

</llo_original>
